<compile_context>
chip_gen: v5e
topology: v5e:2x2
jax: 0.10.0
libtpu: 0.0.40
codegen_flags: <defaults>
</compile_context>

<pallas_src>
import functools

import jax
import jax.numpy as jnp
from jax.experimental import pallas as pl
from jax.experimental.pallas import tpu as pltpu


NPAD = 128  # lane-dense fc output width; real logits live in columns [:2]


# ---------------------------------------------------------------------------
# Fused kernel: stem im2col matmul + BN bias + SiLU
#               -> head 1x1 conv matmul + BN bias + SiLU
#               -> MXU global average pool -> fc into a lane-dense 128 slab.
# One grid step == Bt batch elements; every intermediate stays in VMEM.
# ---------------------------------------------------------------------------
def _fused_forward_kernel(z_ref, w9_ref, bs_ref, wh_ref, bh_ref,
                          pool_ref, wf_ref, bf_ref, o_ref):
    # z_ref   : (Bt*msP, 9*Cin) bf16   -- im2col rows of Bt images (contiguous)
    # w9_ref  : (9*Cin, C_stem) bf16   -- conv taps, BN scale folded in
    # bs/bh   : (1, N) f32 folded-BN biases
    # wh_ref  : (C_stem, C_head) bf16
    # pool_ref: (Bt, Bt*msP) f32       -- per-image mean weights (0 on pad rows)
    # wf_ref  : (C_head, 128) f32      -- fc weight zero-padded to 128 lanes
    # bf_ref  : (1, 128) f32
    # o_ref   : (1, Bt, 128) f32
    stem = (jnp.dot(z_ref[...], w9_ref[...],
                    preferred_element_type=jnp.float32) + bs_ref[...])
    stem = stem * jax.nn.sigmoid(stem)                      # SiLU, f32

    head = (jnp.dot(stem.astype(jnp.bfloat16), wh_ref[...],
                    preferred_element_type=jnp.float32) + bh_ref[...])
    head = head * jax.nn.sigmoid(head)                      # (Bt*msP, C_head)

    # MXU pool: per-image masked mean, then fc into the padded 128-lane slab.
    pooled = jnp.dot(pool_ref[...], head,
                     preferred_element_type=jnp.float32)    # (Bt, C_head)
    logits = jnp.dot(pooled, wf_ref[...],
                     preferred_element_type=jnp.float32) + bf_ref[...]
    o_ref[0] = logits.astype(o_ref.dtype)                   # (Bt, 128) unmasked


def fused_forward(zf, w9, bs, wh, bh, pool, wf, bf, *, n_groups, bt):
    """zf: [B*msP, 9*Cin] bf16 (rows grouped per image) -> [B, 128] f32."""
    rows, k9 = zf.shape
    rpg = rows // n_groups                 # rows per grid step = Bt * msP
    cs = w9.shape[1]
    ch = wh.shape[1]
    npad = wf.shape[1]
    out = pl.pallas_call(
        _fused_forward_kernel,
        out_shape=jax.ShapeDtypeStruct((n_groups, bt, npad), jnp.float32),
        grid_spec=pltpu.PrefetchScalarGridSpec(
            num_scalar_prefetch=0,
            grid=(n_groups,),
            in_specs=[
                pl.BlockSpec((rpg, k9), lambda g: (g, 0)),    # im2col rows
                pl.BlockSpec((k9, cs), lambda g: (0, 0)),     # stem taps
                pl.BlockSpec((1, cs), lambda g: (0, 0)),      # stem bias
                pl.BlockSpec((cs, ch), lambda g: (0, 0)),     # head weight
                pl.BlockSpec((1, ch), lambda g: (0, 0)),      # head bias
                pl.BlockSpec((bt, rpg), lambda g: (0, 0)),    # pool matrix
                pl.BlockSpec((ch, npad), lambda g: (0, 0)),   # fc weight (padded)
                pl.BlockSpec((1, npad), lambda g: (0, 0)),    # fc bias (padded)
            ],
            out_specs=pl.BlockSpec((1, bt, npad), lambda g: (g, 0, 0)),
        ),
        compiler_params=pltpu.CompilerParams(
            dimension_semantics=("parallel",),
            vmem_limit_bytes=16 * 1024 * 1024),
    )(zf, w9, bs, wh, bh, pool, wf, bf)
    return out.reshape(n_groups * bt, npad)


# ---------------------------------------------------------------------------
# Wrapper-side layout plumbing (pure XLA reshuffles).
# ---------------------------------------------------------------------------
def im2col_s2(x_nhwc, oh, ow):
    """3x3/s2/p1 conv input -> (B, oh*ow, 9*Cin), tap order dy-major, dx, c."""
    B, H, W, C = x_nhwc.shape
    xpad = jnp.pad(x_nhwc, ((0, 0), (1, 1), (1, 1), (0, 0)))
    taps = []
    for dy in range(3):
        for dx in range(3):
            t = jax.lax.slice(
                xpad,
                (0, dy, dx, 0),
                (B, dy + 2 * (oh - 1) + 1, dx + 2 * (ow - 1) + 1, C),
                (1, 2, 2, 1))                                 # (B, oh, ow, C)
            taps.append(t)
    patches = jnp.concatenate(taps, axis=-1)                  # (B, oh, ow, 9C)
    return patches.reshape(B, oh * ow, 9 * C)


def prepare_kernel_weights(params, n_pad=NPAD):
    """Fold BN scales, repack PyTorch-layout weights for the fused kernel."""
    w = params["stem_w"]                                      # (Cs, Cin, 3, 3)
    cs, cin = w.shape[0], w.shape[1]
    wt = jnp.transpose(w, (2, 3, 1, 0))                       # (ky, kx, Cin, Cs)
    wt = wt * params["stem_scale"][None, None, None, :]       # fold BN scale
    w9 = wt.reshape(9 * cin, cs)                              # matches im2col order
    wh = params["head_w"].T * params["head_scale"][None, :]   # (Cs, Ch)
    ch = wh.shape[1]
    nout = params["fc_w"].shape[0]
    wf = jnp.zeros((ch, n_pad), jnp.float32).at[:, :nout].set(params["fc_w"].T)
    bf = jnp.zeros((1, n_pad), jnp.float32).at[0, :nout].set(params["fc_b"])
    return {
        "w9": w9.astype(jnp.bfloat16),
        "bs": params["stem_bias"].reshape(1, -1).astype(jnp.float32),
        "wh": wh.astype(jnp.bfloat16),
        "bh": params["head_bias"].reshape(1, -1).astype(jnp.float32),
        "wf": wf,
        "bf": bf,
    }


def init_params(key, c_in=3, c_stem=32, c_head=64, n_out=2):
    """Deterministic stand-in parameters, stored in PyTorch layouts."""
    ks = jax.random.split(key, 7)
    return {
        "stem_w": 0.25 * jax.random.normal(ks[0], (c_stem, c_in, 3, 3), jnp.float32),
        "stem_scale": 1.0 + 0.1 * jax.random.normal(ks[1], (c_stem,), jnp.float32),
        "stem_bias": 0.05 * jax.random.normal(ks[2], (c_stem,), jnp.float32),
        "head_w": 0.2 * jax.random.normal(ks[3], (c_head, c_stem), jnp.float32),
        "head_scale": 1.0 + 0.1 * jax.random.normal(ks[4], (c_head,), jnp.float32),
        "head_bias": 0.05 * jax.random.normal(ks[5], (c_head,), jnp.float32),
        "fc_w": 0.2 * jax.random.normal(ks[6], (n_out, c_head), jnp.float32),
        "fc_b": jnp.zeros((n_out,), jnp.float32),
    }


@jax.jit
def model_forward(params, x_nchw):
    kp = prepare_kernel_weights(params)
    x = jnp.transpose(x_nchw, (0, 2, 3, 1)).astype(jnp.bfloat16)   # NHWC, bf16
    B, H, W, C = x.shape
    oh = (H - 1) // 2 + 1            # = ceil(H/2), matches PyTorch conv(k3,s2,p1)
    ow = (W - 1) // 2 + 1
    ms = oh * ow
    msp = ((ms + 7) // 8) * 8        # sublane-aligned rows per image (zero pad)
    # Images per grid step: amortise per-step overhead, keep (8,128) rules happy.
    if B <= 8:
        bt = B
    else:
        bt = next(d for d in (8, 4, 2, 1) if B % d == 0)
    n_groups = B // bt

    patches = im2col_s2(x, oh, ow)                             # (B, ms, 9C) bf16
    if msp != ms:
        patches = jnp.pad(patches, ((0, 0), (0, msp - ms), (0, 0)))
    zf = patches.reshape(B * msp, 9 * C)                       # contiguous rows

    # Per-group pooling matrix: 1/(oh*ow) on valid rows, 0 on padded rows, so
    # the pool is a single MXU matmul and padded rows never reach the mean.
    valid = (jnp.arange(msp) < ms).astype(jnp.float32) / float(ms)
    pool = (jnp.eye(bt, dtype=jnp.float32)[:, :, None]
            * valid[None, None, :]).reshape(bt, bt * msp)

    logits = fused_forward(zf, kp["w9"], kp["bs"], kp["wh"], kp["bh"],
                           pool, kp["wf"], kp["bf"],
                           n_groups=n_groups, bt=bt)
    return logits[:, :2]                                       # real logits


# ---------------------------------------------------------------------------
# Pure-JAX reference (same bf16 quantisation points) for a correctness check.
# ---------------------------------------------------------------------------
def reference_forward(params, x_nchw):
    x = jnp.transpose(x_nchw, (0, 2, 3, 1)).astype(jnp.bfloat16).astype(jnp.float32)
    w = params["stem_w"] * params["stem_scale"][:, None, None, None]
    w = w.astype(jnp.bfloat16).astype(jnp.float32)
    y = jax.lax.conv_general_dilated(
        x, jnp.transpose(w, (2, 3, 1, 0)), window_strides=(2, 2),
        padding=((1, 1), (1, 1)), dimension_numbers=("NHWC", "HWIO", "NHWC"))
    y = y + params["stem_bias"][None, None, None, :]
    y = y * jax.nn.sigmoid(y)
    y = y.astype(jnp.bfloat16).astype(jnp.float32)
    wh = (params["head_w"].T * params["head_scale"][None, :])
    wh = wh.astype(jnp.bfloat16).astype(jnp.float32)
    h = jnp.einsum("bhwc,cn->bhwn", y, wh) + params["head_bias"]
    h = h * jax.nn.sigmoid(h)
    pooled = jnp.mean(h, axis=(1, 2))
    return pooled @ params["fc_w"].T + params["fc_b"][None, :]


if __name__ == "__main__":
    key = jax.random.PRNGKey(0)
    k_param, k_data, k_data2 = jax.random.split(key, 3)

    params = init_params(k_param)
    # Input like the PyTorch module: NCHW face-image batch (small toy shape).
    x = jax.random.normal(k_data, (2, 3, 16, 16), jnp.float32)

    out = model_forward(params, x)
    jax.block_until_ready(out)
    assert out.shape == (2, 2) and out.dtype == jnp.float32

    ref = reference_forward(params, x)
    err = float(jnp.max(jnp.abs(out - ref)))
    assert err < 1e-2, f"kernel vs reference mismatch: max abs err = {err}"

    # Odd spatial size: exercises ceil(H/2) output, sublane row padding and the
    # masked (MXU) pooling path.
    x2 = jax.random.normal(k_data2, (2, 3, 14, 10), jnp.float32)
    out2 = model_forward(params, x2)
    jax.block_until_ready(out2)
    ref2 = reference_forward(params, x2)
    err2 = float(jnp.max(jnp.abs(out2 - ref2)))
    assert err2 < 1e-2, f"kernel vs reference mismatch (odd HW): max abs err = {err2}"

    print("KERNEL_OK")
</pallas_src>

<mosaic_0001>
module attributes {stable_mosaic.version = 11 : i64} {
  func.func @_fused_forward_kernel(%arg0: i32, %arg1: memref<128x27xbf16, #tpu.memory_space<vmem>>, %arg2: memref<27x32xbf16, #tpu.memory_space<vmem>>, %arg3: memref<1x32xf32, #tpu.memory_space<vmem>>, %arg4: memref<32x64xbf16, #tpu.memory_space<vmem>>, %arg5: memref<1x64xf32, #tpu.memory_space<vmem>>, %arg6: memref<2x128xf32, #tpu.memory_space<vmem>>, %arg7: memref<64x128xf32, #tpu.memory_space<vmem>>, %arg8: memref<1x128xf32, #tpu.memory_space<vmem>>, %arg9: memref<1x2x128xf32, #tpu.memory_space<vmem>>) attributes {dimension_semantics = [#tpu.dimension_semantics<parallel>], iteration_bounds = array<i64: 1>, scalar_prefetch = 0 : i64, scratch_operands = 0 : i64, tpu.core_type = #tpu.core_type<tc>, window_params = [{transform_indices = @transform_0, window_bounds = array<i64: 128, 27>}, {pipeline_mode = #tpu.pipeline_mode<synchronous>, transform_indices = @transform_1, window_bounds = array<i64: 27, 32>}, {pipeline_mode = #tpu.pipeline_mode<synchronous>, transform_indices = @transform_2, window_bounds = array<i64: 1, 32>}, {pipeline_mode = #tpu.pipeline_mode<synchronous>, transform_indices = @transform_3, window_bounds = array<i64: 32, 64>}, {pipeline_mode = #tpu.pipeline_mode<synchronous>, transform_indices = @transform_4, window_bounds = array<i64: 1, 64>}, {pipeline_mode = #tpu.pipeline_mode<synchronous>, transform_indices = @transform_5, window_bounds = array<i64: 2, 128>}, {pipeline_mode = #tpu.pipeline_mode<synchronous>, transform_indices = @transform_6, window_bounds = array<i64: 64, 128>}, {pipeline_mode = #tpu.pipeline_mode<synchronous>, transform_indices = @transform_7, window_bounds = array<i64: 1, 128>}, {transform_indices = @transform_8, window_bounds = array<i64: 1, 2, 128>}]} {
    %c0 = arith.constant 0 : index
    %c0_0 = arith.constant 0 : index
    %0 = vector.load %arg1[%c0, %c0_0] : memref<128x27xbf16, #tpu.memory_space<vmem>>, vector<128x27xbf16>
    %c0_1 = arith.constant 0 : index
    %c0_2 = arith.constant 0 : index
    %1 = vector.load %arg2[%c0_1, %c0_2] : memref<27x32xbf16, #tpu.memory_space<vmem>>, vector<27x32xbf16>
    %cst = arith.constant dense<0.000000e+00> : vector<128x32xf32>
    %2 = tpu.matmul %0, %1, %cst {dimension_numbers = #tpu.dot_dimension_numbers<[1], [0], [0], [1], [0, 0, 1, 1], [], []>} : vector<128x27xbf16>, vector<27x32xbf16>, vector<128x32xf32> -> vector<128x32xf32>
    %c0_3 = arith.constant 0 : index
    %c0_4 = arith.constant 0 : index
    %3 = vector.load %arg3[%c0_3, %c0_4] : memref<1x32xf32, #tpu.memory_space<vmem>>, vector<1x32xf32>
    %4 = vector.broadcast %3 : vector<1x32xf32> to vector<128x32xf32>
    %5 = arith.addf %2, %4 : vector<128x32xf32>
    %6 = arith.negf %5 : vector<128x32xf32>
    %7 = math.exp %6 : vector<128x32xf32>
    %cst_5 = arith.constant 1.000000e+00 : f32
    %8 = vector.broadcast %cst_5 : f32 to vector<128x32xf32>
    %9 = arith.addf %8, %7 : vector<128x32xf32>
    %10 = arith.divf %8, %9 : vector<128x32xf32>
    %11 = arith.mulf %5, %10 : vector<128x32xf32>
    %12 = arith.truncf %11 : vector<128x32xf32> to vector<128x32xbf16>
    %c0_6 = arith.constant 0 : index
    %c0_7 = arith.constant 0 : index
    %13 = vector.load %arg4[%c0_6, %c0_7] : memref<32x64xbf16, #tpu.memory_space<vmem>>, vector<32x64xbf16>
    %cst_8 = arith.constant dense<0.000000e+00> : vector<128x64xf32>
    %14 = tpu.matmul %12, %13, %cst_8 {dimension_numbers = #tpu.dot_dimension_numbers<[1], [0], [0], [1], [0, 0, 1, 1], [], []>} : vector<128x32xbf16>, vector<32x64xbf16>, vector<128x64xf32> -> vector<128x64xf32>
    %c0_9 = arith.constant 0 : index
    %c0_10 = arith.constant 0 : index
    %15 = vector.load %arg5[%c0_9, %c0_10] : memref<1x64xf32, #tpu.memory_space<vmem>>, vector<1x64xf32>
    %16 = vector.broadcast %15 : vector<1x64xf32> to vector<128x64xf32>
    %17 = arith.addf %14, %16 : vector<128x64xf32>
    %18 = arith.negf %17 : vector<128x64xf32>
    %19 = math.exp %18 : vector<128x64xf32>
    %cst_11 = arith.constant 1.000000e+00 : f32
    %20 = vector.broadcast %cst_11 : f32 to vector<128x64xf32>
    %21 = arith.addf %20, %19 : vector<128x64xf32>
    %22 = arith.divf %20, %21 : vector<128x64xf32>
    %23 = arith.mulf %17, %22 : vector<128x64xf32>
    %c0_12 = arith.constant 0 : index
    %c0_13 = arith.constant 0 : index
    %24 = vector.load %arg6[%c0_12, %c0_13] : memref<2x128xf32, #tpu.memory_space<vmem>>, vector<2x128xf32>
    %cst_14 = arith.constant dense<0.000000e+00> : vector<2x64xf32>
    %25 = tpu.matmul %24, %23, %cst_14 {dimension_numbers = #tpu.dot_dimension_numbers<[1], [0], [0], [1], [0, 0, 1, 1], [], []>} : vector<2x128xf32>, vector<128x64xf32>, vector<2x64xf32> -> vector<2x64xf32>
    %c0_15 = arith.constant 0 : index
    %c0_16 = arith.constant 0 : index
    %26 = vector.load %arg7[%c0_15, %c0_16] : memref<64x128xf32, #tpu.memory_space<vmem>>, vector<64x128xf32>
    %cst_17 = arith.constant dense<0.000000e+00> : vector<2x128xf32>
    %27 = tpu.matmul %25, %26, %cst_17 {dimension_numbers = #tpu.dot_dimension_numbers<[1], [0], [0], [1], [0, 0, 1, 1], [], []>} : vector<2x64xf32>, vector<64x128xf32>, vector<2x128xf32> -> vector<2x128xf32>
    %c0_18 = arith.constant 0 : index
    %c0_19 = arith.constant 0 : index
    %28 = vector.load %arg8[%c0_18, %c0_19] : memref<1x128xf32, #tpu.memory_space<vmem>>, vector<1x128xf32>
    %29 = vector.broadcast %28 : vector<1x128xf32> to vector<2x128xf32>
    %30 = arith.addf %27, %29 : vector<2x128xf32>
    %c0_20 = arith.constant 0 : index
    %c0_21 = arith.constant 0 : index
    %c0_22 = arith.constant 0 : index
    %31 = vector.load %arg9[%c0_20, %c0_21, %c0_22] : memref<1x2x128xf32, #tpu.memory_space<vmem>>, vector<1x2x128xf32>
    %32 = vector.shape_cast %31 : vector<1x2x128xf32> to vector<2x128xf32>
    %33 = vector.shape_cast %30 : vector<2x128xf32> to vector<1x2x128xf32>
    tpu.vector_store %arg9[%c0_20, %c0_21, %c0_22], %33 {strides = array<i32>} : memref<1x2x128xf32, #tpu.memory_space<vmem>>, vector<1x2x128xf32>,
    return
  }
  func.func @transform_0(%arg0: i32) -> (i32, i32) {
    %c0_i32 = arith.constant 0 : i32
    %c0_i32_0 = arith.constant 0 : i32
    return %arg0, %c0_i32 : i32, i32
  }
  func.func @transform_1(%arg0: i32) -> (i32, i32) {
    %c0_i32 = arith.constant 0 : i32
    %c0_i32_0 = arith.constant 0 : i32
    %c0_i32_1 = arith.constant 0 : i32
    return %c0_i32, %c0_i32_0 : i32, i32
  }
  func.func @transform_2(%arg0: i32) -> (i32, i32) {
    %c0_i32 = arith.constant 0 : i32
    %c0_i32_0 = arith.constant 0 : i32
    %c0_i32_1 = arith.constant 0 : i32
    return %c0_i32, %c0_i32_0 : i32, i32
  }
  func.func @transform_3(%arg0: i32) -> (i32, i32) {
    %c0_i32 = arith.constant 0 : i32
    %c0_i32_0 = arith.constant 0 : i32
    %c0_i32_1 = arith.constant 0 : i32
    return %c0_i32, %c0_i32_0 : i32, i32
  }
  func.func @transform_4(%arg0: i32) -> (i32, i32) {
    %c0_i32 = arith.constant 0 : i32
    %c0_i32_0 = arith.constant 0 : i32
    %c0_i32_1 = arith.constant 0 : i32
    return %c0_i32, %c0_i32_0 : i32, i32
  }
  func.func @transform_5(%arg0: i32) -> (i32, i32) {
    %c0_i32 = arith.constant 0 : i32
    %c0_i32_0 = arith.constant 0 : i32
    %c0_i32_1 = arith.constant 0 : i32
    return %c0_i32, %c0_i32_0 : i32, i32
  }
  func.func @transform_6(%arg0: i32) -> (i32, i32) {
    %c0_i32 = arith.constant 0 : i32
    %c0_i32_0 = arith.constant 0 : i32
    %c0_i32_1 = arith.constant 0 : i32
    return %c0_i32, %c0_i32_0 : i32, i32
  }
  func.func @transform_7(%arg0: i32) -> (i32, i32) {
    %c0_i32 = arith.constant 0 : i32
    %c0_i32_0 = arith.constant 0 : i32
    %c0_i32_1 = arith.constant 0 : i32
    return %c0_i32, %c0_i32_0 : i32, i32
  }
  func.func @transform_8(%arg0: i32) -> (i32, i32, i32) {
    %c0_i32 = arith.constant 0 : i32
    %c0_i32_0 = arith.constant 0 : i32
    %c0_i32_1 = arith.constant 0 : i32
    return %arg0, %c0_i32, %c0_i32_0 : i32, i32, i32
  }
}

</mosaic_0001>

<llo_original>
// kernel: model_forward.1
$region0: #{model_forward.1}
  #allocation0 [shape = 'u32[]', space=smem, size = 0x4, offset = 0x4, fixed_abs, tag = 'smem constant byte address 0x4 - core index']
  #allocation1 [shape = 'u32[72,128]{1,0:T(1,128)}', space=vmem, size = 0x9000, scoped, tag = 'internal scratch']
  %s0 = inlined_call_operand.vmem [shape: bf16[128,27], index: 0, kind: input, shape index: {}]
  %s1 = inlined_call_operand.vmem [shape: bf16[27,32], index: 1, kind: input, shape index: {}]
  %s2 = inlined_call_operand.vmem [shape: f32[1,32], index: 2, kind: input, shape index: {}]
  %s3 = inlined_call_operand.vmem [shape: bf16[32,64], index: 3, kind: input, shape index: {}]
  %s4 = inlined_call_operand.vmem [shape: f32[1,64], index: 4, kind: input, shape index: {}]
  %s5 = inlined_call_operand.vmem [shape: f32[2,128], index: 5, kind: input, shape index: {}]
  %s6 = inlined_call_operand.vmem [shape: f32[64,128], index: 6, kind: input, shape index: {}]
  %s7 = inlined_call_operand.vmem [shape: f32[1,128], index: 7, kind: input, shape index: {}]
  %s8 = inlined_call_operand.hbm [shape: f32[1,2,128], index: 8, kind: output, shape index: {}]
  %s9 = sld [smem:[#allocation0]]
  $region42: #{model_forward.1} parent=0
    _
  %s11 = ssub.s32 1, %s9
  %s12 = scalar_select 0, %s11, %s9
  $region1: #{model_forward.1} parent=0
    #allocation2 [shape = 'u8[1024]{0}', space=vmem, size = 0x400, scoped, tag = 'output window, operand 0, single buffered']
    #allocation3 [shape = 's32[1]{0}', space=sflag, size = 0x4, scoped, tag = 'scoped memory for model_forward.1']
    %13 = vsyncpa [#allocation3], 0
    // Predicated region
    $region2: #{model_forward.1} parent=1 // pred_check
      _
    $region3: #{model_forward.1} parent=1 // pred_check_branch
      %15 = sbr.rel (0) target = $region5
    $region4: #{model_forward.1} parent=1 // pred_region
      _
    $region5: #{model_forward.1} parent=1 // pred_fallthru
      _
    // Predicated region
    $region6: #{model_forward.1} parent=1 // pred_check
      _
    $region7: #{model_forward.1} parent=1 // pred_check_branch
      %17 = sbr.rel (0) target = $region9
    $region8: #{model_forward.1} parent=1 // pred_region
      _
    $region9: #{model_forward.1} parent=1 // pred_fallthru
      _
    // Predicated region
    $region10: #{model_forward.1} parent=1 // pred_check
      _
    $region11: #{model_forward.1} parent=1 // pred_check_branch
      %19 = sbr.rel (0) target = $region13
    $region12: #{model_forward.1} parent=1 // pred_region
      _
    $region13: #{model_forward.1} parent=1 // pred_fallthru
      _
    // Predicated region
    $region14: #{model_forward.1} parent=1 // pred_check
      _
    $region15: #{model_forward.1} parent=1 // pred_check_branch
      %21 = sbr.rel (0) target = $region17
    $region16: #{model_forward.1} parent=1 // pred_region
      _
    $region17: #{model_forward.1} parent=1 // pred_fallthru
      _
    // Predicated region
    $region18: #{model_forward.1} parent=1 // pred_check
      _
    $region19: #{model_forward.1} parent=1 // pred_check_branch
      %23 = sbr.rel (0) target = $region21
    $region20: #{model_forward.1} parent=1 // pred_region
      _
    $region21: #{model_forward.1} parent=1 // pred_fallthru
      _
    // Predicated region
    $region22: #{model_forward.1} parent=1 // pred_check
      _
    $region23: #{model_forward.1} parent=1 // pred_check_branch
      %25 = sbr.rel (0) target = $region25
    $region24: #{model_forward.1} parent=1 // pred_region
      _
    $region25: #{model_forward.1} parent=1 // pred_fallthru
      _
    // Predicated region
    $region26: #{model_forward.1} parent=1 // pred_check
      _
    $region27: #{model_forward.1} parent=1 // pred_check_branch
      %27 = sbr.rel (0) target = $region29
    $region28: #{model_forward.1} parent=1 // pred_region
      _
    $region29: #{model_forward.1} parent=1 // pred_fallthru
      _
    // Predicated region
    $region30: #{model_forward.1} parent=1 // pred_check
      _
    $region31: #{model_forward.1} parent=1 // pred_check_branch
      %29 = sbr.rel (0) target = $region33
    $region32: #{model_forward.1} parent=1 // pred_region
      _
    $region33: #{model_forward.1} parent=1 // pred_fallthru
      _
    %v31 = vld [vmem:[%s0] sm:$0xf]
    %v32 = vld [vmem:[%s0 + $0x4] sm:$0xf]
    %v33 = vld [vmem:[%s0 + $0x8] sm:$0xf]
    %v34 = vld [vmem:[%s0 + $0xc] sm:$0xf]
    %v35 = vld [vmem:[%s0 + $0x10] sm:$0xf]
    %v36 = vld [vmem:[%s0 + $0x14] sm:$0xf]
    %v37 = vld [vmem:[%s0 + $0x18] sm:$0xf]
    %v38 = vld [vmem:[%s0 + $0x1c] sm:$0xf]
    %v39 = vld [vmem:[%s0 + $0x20] sm:$0xf]
    %v40 = vld [vmem:[%s0 + $0x24] sm:$0xf]
    %v41 = vld [vmem:[%s0 + $0x28] sm:$0xf]
    %v42 = vld [vmem:[%s0 + $0x2c] sm:$0xf]
    %v43 = vld [vmem:[%s0 + $0x30] sm:$0xf]
    %v44 = vld [vmem:[%s0 + $0x34] sm:$0xf]
    %v45 = vld [vmem:[%s0 + $0x38] sm:$0xf]
    %v46 = vld [vmem:[%s0 + $0x3c] sm:$0xf]
    %v47 = vld [vmem:[%s1] sm:$0xf]
    %v48 = vld [vmem:[%s1 + $0x4] sm:$0xf]
    %v49 = vld [vmem:[%s1 + $0x8] sm:$0xf]
    %v50 = vld [vmem:[%s1 + $0xc] sm:$0x3]
    %v51 = vld [vmem:[%s2] sm:$0x1]
    %v53 = vperm.slane %v51, 0
    %v71 = vunpack.c.l.b16 %v31
    %v72 = vunpack.c.l.b16 %v32
    %v73 = vunpack.c.l.b16 %v33
    %v74 = vunpack.c.l.b16 %v34
    %v75 = vunpack.c.l.b16 %v35
    %v76 = vunpack.c.l.b16 %v36
    %v77 = vunpack.c.l.b16 %v37
    %v78 = vunpack.c.l.b16 %v38
    %v79 = vunpack.c.l.b16 %v39
    %v80 = vunpack.c.l.b16 %v40
    %v81 = vunpack.c.l.b16 %v41
    %v82 = vunpack.c.l.b16 %v42
    %v83 = vunpack.c.l.b16 %v43
    %v84 = vunpack.c.l.b16 %v44
    %v85 = vunpack.c.l.b16 %v45
    %v86 = vunpack.c.l.b16 %v46
    %v87 = vpack.c.b16 %v72, %v71
    %v88 = vpack.c.b16 %v74, %v73
    %v89 = vpack.c.b16 %v76, %v75
    %v90 = vpack.c.b16 %v78, %v77
    %v91 = vpack.c.b16 %v80, %v79
    %v92 = vpack.c.b16 %v82, %v81
    %v93 = vpack.c.b16 %v84, %v83
    %v94 = vpack.c.b16 %v86, %v85
    %v99 = vunpack.c.l.b16 %v47
    %v100 = vunpack.c.l.b16 %v48
    %v101 = vunpack.c.l.b16 %v49
    %v102 = vunpack.c.l.b16 %v50
    %v103 = vpack.c.b16 %v100, %v99
    %v104 = vpack.c.b16 %v102, %v101
    %vm106 = vcmask 220160
    %v108 = vsel %vm106, %v87, 0
    %v111 = vsel %vm106, %v88, 0
    %v114 = vsel %vm106, %v89, 0
    %v117 = vsel %vm106, %v90, 0
    %v120 = vsel %vm106, %v91, 0
    %v123 = vsel %vm106, %v92, 0
    %v126 = vsel %vm106, %v93, 0
    %v129 = vsel %vm106, %v94, 0
    %vm131 = vcmask 1044480
    %vm132 = vcmask 1045504
    %v133 = vsel %vm131, 4294967295, 65535
    %v134 = vsel %vm132, %v133, 0
    %v136 = vand.u32 %v104, %v134
    %138 = vmatpush.bf16.msra.mxu0 0
    %139 = vmatpush.bf16.msra.mxu0 0
    %140 = vmatpush.bf16.msra.mxu0 0
    %141 = vmatpush.bf16.msra.mxu0 0
    %142 = vmatpush.bf16.msra.mxu0 0
    %143 = vmatpush.bf16.msra.mxu0 0
    %144 = vmatpush.bf16.msra.mxu0 %v136
    %145 = vmatpush.bf16.msra.mxu0 %v103
    %146 = vmatmul.bf16.gmra.mxu0 %v108
    %v147 = vpop.f32.mrf.mxu0
    %v148 = vadd.f32 %v53, %v147
    %v149 = vpop.f32.mrf.mxu0
    %v150 = vadd.f32 %v53, %v149
    %151 = vmatmul.bf16.gmra.mxu0 %v111
    %v152 = vpop.f32.mrf.mxu0
    %v153 = vadd.f32 %v53, %v152
    %v154 = vpop.f32.mrf.mxu0
    %v155 = vadd.f32 %v53, %v154
    %156 = vmatmul.bf16.gmra.mxu0 %v114
    %v157 = vpop.f32.mrf.mxu0
    %v158 = vadd.f32 %v53, %v157
    %v159 = vpop.f32.mrf.mxu0
    %v160 = vadd.f32 %v53, %v159
    %161 = vmatmul.bf16.gmra.mxu0 %v117
    %v162 = vpop.f32.mrf.mxu0
    %v163 = vadd.f32 %v53, %v162
    %v164 = vpop.f32.mrf.mxu0
    %v165 = vadd.f32 %v53, %v164
    %166 = vmatmul.bf16.gmra.mxu0 %v120
    %v167 = vpop.f32.mrf.mxu0
    %v168 = vadd.f32 %v53, %v167
    %v169 = vpop.f32.mrf.mxu0
    %v170 = vadd.f32 %v53, %v169
    %171 = vmatmul.bf16.gmra.mxu0 %v123
    %v172 = vpop.f32.mrf.mxu0
    %v173 = vadd.f32 %v53, %v172
    %v174 = vpop.f32.mrf.mxu0
    %v175 = vadd.f32 %v53, %v174
    %176 = vmatmul.bf16.gmra.mxu0 %v126
    %v177 = vpop.f32.mrf.mxu0
    %v178 = vadd.f32 %v53, %v177
    %v179 = vpop.f32.mrf.mxu0
    %v180 = vadd.f32 %v53, %v179
    %181 = vmatmul.bf16.gmra.mxu0 %v129
    %v182 = vpop.f32.mrf.mxu0
    %v183 = vadd.f32 %v53, %v182
    %v184 = vpop.f32.mrf.mxu0
    %v185 = vadd.f32 %v53, %v184
    %186 = vdwg.mxu0
    %v187 = vxor.u32 %v148, 2147483648
    %v188 = vxor.u32 %v150, 2147483648
    %v189 = vxor.u32 %v153, 2147483648
    %v190 = vxor.u32 %v155, 2147483648
    %v191 = vxor.u32 %v158, 2147483648
    %v192 = vxor.u32 %v160, 2147483648
    %v193 = vxor.u32 %v163, 2147483648
    %v194 = vxor.u32 %v165, 2147483648
    %v195 = vxor.u32 %v168, 2147483648
    %v196 = vxor.u32 %v170, 2147483648
    %v197 = vxor.u32 %v173, 2147483648
    %v198 = vxor.u32 %v175, 2147483648
    %v199 = vxor.u32 %v178, 2147483648
    %v200 = vxor.u32 %v180, 2147483648
    %v201 = vxor.u32 %v183, 2147483648
    %v202 = vxor.u32 %v185, 2147483648
    %v203 = vmul.f32 %v187, 1.442695
    %v204 = vpow.pop %v203
    %v205 = vmul.f32 %v188, 1.442695
    %v206 = vpow.pop %v205
    %v207 = vmul.f32 %v189, 1.442695
    %v208 = vpow.pop %v207
    %v209 = vmul.f32 %v190, 1.442695
    %v210 = vpow.pop %v209
    %v211 = vmul.f32 %v191, 1.442695
    %v212 = vpow.pop %v211
    %v213 = vmul.f32 %v192, 1.442695
    %v214 = vpow.pop %v213
    %v215 = vmul.f32 %v193, 1.442695
    %v216 = vpow.pop %v215
    %v217 = vmul.f32 %v194, 1.442695
    %v218 = vpow.pop %v217
    %v219 = vmul.f32 %v195, 1.442695
    %v220 = vpow.pop %v219
    %v221 = vmul.f32 %v196, 1.442695
    %v222 = vpow.pop %v221
    %v223 = vmul.f32 %v197, 1.442695
    %v224 = vpow.pop %v223
    %v225 = vmul.f32 %v198, 1.442695
    %v226 = vpow.pop %v225
    %v227 = vmul.f32 %v199, 1.442695
    %v228 = vpow.pop %v227
    %v229 = vmul.f32 %v200, 1.442695
    %v230 = vpow.pop %v229
    %v231 = vmul.f32 %v201, 1.442695
    %v232 = vpow.pop %v231
    %v233 = vmul.f32 %v202, 1.442695
    %v234 = vpow.pop %v233
    %v235 = vadd.f32 %v204, 1.0
    %v236 = vadd.f32 %v206, 1.0
    %v237 = vadd.f32 %v208, 1.0
    %v238 = vadd.f32 %v210, 1.0
    %v239 = vadd.f32 %v212, 1.0
    %v240 = vadd.f32 %v214, 1.0
    %v241 = vadd.f32 %v216, 1.0
    %v242 = vadd.f32 %v218, 1.0
    %v243 = vadd.f32 %v220, 1.0
    %v244 = vadd.f32 %v222, 1.0
    %v245 = vadd.f32 %v224, 1.0
    %v246 = vadd.f32 %v226, 1.0
    %v247 = vadd.f32 %v228, 1.0
    %v248 = vadd.f32 %v230, 1.0
    %v249 = vadd.f32 %v232, 1.0
    %v250 = vadd.f32 %v234, 1.0
    %v251 = vrcp.pop %v235
    %v252 = vmul.f32 %v235, %v251
    %v253 = vsub.f32 1.0, %v252
    %v254 = vmul.f32 %v251, %v253
    %v255 = vadd.f32 %v251, %v254
    %vm256 = vweird.f32 %v235
    %vm257 = vweird.f32 %v251
    %vm258 = vmor %vm256, %vm257
    %v259 = vsel %vm258, %v251, %v255
    %v260 = vand.u32 2147483647, %v235
    %vm261 = vcmp.eq.f32.partialorder %v260, 8.507059e+37
    %v262 = vand.u32 %v235, 2147483648
    %v263 = vor.u32 1.1754944e-38, %v262
    %v264 = vsel %vm261, %v263, %v259
    %v265 = vmul.f32 1.0, %v264
    %v266 = vrcp.pop %v236
    %v267 = vmul.f32 %v236, %v266
    %v268 = vsub.f32 1.0, %v267
    %v269 = vmul.f32 %v266, %v268
    %v270 = vadd.f32 %v266, %v269
    %vm271 = vweird.f32 %v236
    %vm272 = vweird.f32 %v266
    %vm273 = vmor %vm271, %vm272
    %v274 = vsel %vm273, %v266, %v270
    %v275 = vand.u32 2147483647, %v236
    %vm276 = vcmp.eq.f32.partialorder %v275, 8.507059e+37
    %v277 = vand.u32 %v236, 2147483648
    %v278 = vor.u32 1.1754944e-38, %v277
    %v279 = vsel %vm276, %v278, %v274
    %v280 = vmul.f32 1.0, %v279
    %v281 = vrcp.pop %v237
    %v282 = vmul.f32 %v237, %v281
    %v283 = vsub.f32 1.0, %v282
    %v284 = vmul.f32 %v281, %v283
    %v285 = vadd.f32 %v281, %v284
    %vm286 = vweird.f32 %v237
    %vm287 = vweird.f32 %v281
    %vm288 = vmor %vm286, %vm287
    %v289 = vsel %vm288, %v281, %v285
    %v290 = vand.u32 2147483647, %v237
    %vm291 = vcmp.eq.f32.partialorder %v290, 8.507059e+37
    %v292 = vand.u32 %v237, 2147483648
    %v293 = vor.u32 1.1754944e-38, %v292
    %v294 = vsel %vm291, %v293, %v289
    %v295 = vmul.f32 1.0, %v294
    %v296 = vrcp.pop %v238
    %v297 = vmul.f32 %v238, %v296
    %v298 = vsub.f32 1.0, %v297
    %v299 = vmul.f32 %v296, %v298
    %v300 = vadd.f32 %v296, %v299
    %vm301 = vweird.f32 %v238
    %vm302 = vweird.f32 %v296
    %vm303 = vmor %vm301, %vm302
    %v304 = vsel %vm303, %v296, %v300
    %v305 = vand.u32 2147483647, %v238
    %vm306 = vcmp.eq.f32.partialorder %v305, 8.507059e+37
    %v307 = vand.u32 %v238, 2147483648
    %v308 = vor.u32 1.1754944e-38, %v307
    %v309 = vsel %vm306, %v308, %v304
    %v310 = vmul.f32 1.0, %v309
    %v311 = vrcp.pop %v239
    %v312 = vmul.f32 %v239, %v311
    %v313 = vsub.f32 1.0, %v312
    %v314 = vmul.f32 %v311, %v313
    %v315 = vadd.f32 %v311, %v314
    %vm316 = vweird.f32 %v239
    %vm317 = vweird.f32 %v311
    %vm318 = vmor %vm316, %vm317
    %v319 = vsel %vm318, %v311, %v315
    %v320 = vand.u32 2147483647, %v239
    %vm321 = vcmp.eq.f32.partialorder %v320, 8.507059e+37
    %v322 = vand.u32 %v239, 2147483648
    %v323 = vor.u32 1.1754944e-38, %v322
    %v324 = vsel %vm321, %v323, %v319
    %v325 = vmul.f32 1.0, %v324
    %v326 = vrcp.pop %v240
    %v327 = vmul.f32 %v240, %v326
    %v328 = vsub.f32 1.0, %v327
    %v329 = vmul.f32 %v326, %v328
    %v330 = vadd.f32 %v326, %v329
    %vm331 = vweird.f32 %v240
    %vm332 = vweird.f32 %v326
    %vm333 = vmor %vm331, %vm332
    %v334 = vsel %vm333, %v326, %v330
    %v335 = vand.u32 2147483647, %v240
    %vm336 = vcmp.eq.f32.partialorder %v335, 8.507059e+37
    %v337 = vand.u32 %v240, 2147483648
    %v338 = vor.u32 1.1754944e-38, %v337
    %v339 = vsel %vm336, %v338, %v334
    %v340 = vmul.f32 1.0, %v339
    %v341 = vrcp.pop %v241
    %v342 = vmul.f32 %v241, %v341
    %v343 = vsub.f32 1.0, %v342
    %v344 = vmul.f32 %v341, %v343
    %v345 = vadd.f32 %v341, %v344
    %vm346 = vweird.f32 %v241
    %vm347 = vweird.f32 %v341
    %vm348 = vmor %vm346, %vm347
    %v349 = vsel %vm348, %v341, %v345
    %v350 = vand.u32 2147483647, %v241
    %vm351 = vcmp.eq.f32.partialorder %v350, 8.507059e+37
    %v352 = vand.u32 %v241, 2147483648
    %v353 = vor.u32 1.1754944e-38, %v352
    %v354 = vsel %vm351, %v353, %v349
    %v355 = vmul.f32 1.0, %v354
    %v356 = vrcp.pop %v242
    %v357 = vmul.f32 %v242, %v356
    %v358 = vsub.f32 1.0, %v357
    %v359 = vmul.f32 %v356, %v358
    %v360 = vadd.f32 %v356, %v359
    %vm361 = vweird.f32 %v242
    %vm362 = vweird.f32 %v356
    %vm363 = vmor %vm361, %vm362
    %v364 = vsel %vm363, %v356, %v360
    %v365 = vand.u32 2147483647, %v242
    %vm366 = vcmp.eq.f32.partialorder %v365, 8.507059e+37
    %v367 = vand.u32 %v242, 2147483648
    %v368 = vor.u32 1.1754944e-38, %v367
    %v369 = vsel %vm366, %v368, %v364
    %v370 = vmul.f32 1.0, %v369
    %v371 = vrcp.pop %v243
    %v372 = vmul.f32 %v243, %v371
    %v373 = vsub.f32 1.0, %v372
    %v374 = vmul.f32 %v371, %v373
    %v375 = vadd.f32 %v371, %v374
    %vm376 = vweird.f32 %v243
    %vm377 = vweird.f32 %v371
    %vm378 = vmor %vm376, %vm377
    %v379 = vsel %vm378, %v371, %v375
    %v380 = vand.u32 2147483647, %v243
    %vm381 = vcmp.eq.f32.partialorder %v380, 8.507059e+37
    %v382 = vand.u32 %v243, 2147483648
    %v383 = vor.u32 1.1754944e-38, %v382
    %v384 = vsel %vm381, %v383, %v379
    %v385 = vmul.f32 1.0, %v384
    %v386 = vrcp.pop %v244
    %v387 = vmul.f32 %v244, %v386
    %v388 = vsub.f32 1.0, %v387
    %v389 = vmul.f32 %v386, %v388
    %v390 = vadd.f32 %v386, %v389
    %vm391 = vweird.f32 %v244
    %vm392 = vweird.f32 %v386
    %vm393 = vmor %vm391, %vm392
    %v394 = vsel %vm393, %v386, %v390
    %v395 = vand.u32 2147483647, %v244
    %vm396 = vcmp.eq.f32.partialorder %v395, 8.507059e+37
    %v397 = vand.u32 %v244, 2147483648
    %v398 = vor.u32 1.1754944e-38, %v397
    %v399 = vsel %vm396, %v398, %v394
    %v400 = vmul.f32 1.0, %v399
    %v401 = vrcp.pop %v245
    %v402 = vmul.f32 %v245, %v401
    %v403 = vsub.f32 1.0, %v402
    %v404 = vmul.f32 %v401, %v403
    %v405 = vadd.f32 %v401, %v404
    %vm406 = vweird.f32 %v245
    %vm407 = vweird.f32 %v401
    %vm408 = vmor %vm406, %vm407
    %v409 = vsel %vm408, %v401, %v405
    %v410 = vand.u32 2147483647, %v245
    %vm411 = vcmp.eq.f32.partialorder %v410, 8.507059e+37
    %v412 = vand.u32 %v245, 2147483648
    %v413 = vor.u32 1.1754944e-38, %v412
    %v414 = vsel %vm411, %v413, %v409
    %v415 = vmul.f32 1.0, %v414
    %v416 = vrcp.pop %v246
    %v417 = vmul.f32 %v246, %v416
    %v418 = vsub.f32 1.0, %v417
    %v419 = vmul.f32 %v416, %v418
    %v420 = vadd.f32 %v416, %v419
    %vm421 = vweird.f32 %v246
    %vm422 = vweird.f32 %v416
    %vm423 = vmor %vm421, %vm422
    %v424 = vsel %vm423, %v416, %v420
    %v425 = vand.u32 2147483647, %v246
    %vm426 = vcmp.eq.f32.partialorder %v425, 8.507059e+37
    %v427 = vand.u32 %v246, 2147483648
    %v428 = vor.u32 1.1754944e-38, %v427
    %v429 = vsel %vm426, %v428, %v424
    %v430 = vmul.f32 1.0, %v429
    %v431 = vrcp.pop %v247
    %v432 = vmul.f32 %v247, %v431
    %v433 = vsub.f32 1.0, %v432
    %v434 = vmul.f32 %v431, %v433
    %v435 = vadd.f32 %v431, %v434
    %vm436 = vweird.f32 %v247
    %vm437 = vweird.f32 %v431
    %vm438 = vmor %vm436, %vm437
    %v439 = vsel %vm438, %v431, %v435
    %v440 = vand.u32 2147483647, %v247
    %vm441 = vcmp.eq.f32.partialorder %v440, 8.507059e+37
    %v442 = vand.u32 %v247, 2147483648
    %v443 = vor.u32 1.1754944e-38, %v442
    %v444 = vsel %vm441, %v443, %v439
    %v445 = vmul.f32 1.0, %v444
    %v446 = vrcp.pop %v248
    %v447 = vmul.f32 %v248, %v446
    %v448 = vsub.f32 1.0, %v447
    %v449 = vmul.f32 %v446, %v448
    %v450 = vadd.f32 %v446, %v449
    %vm451 = vweird.f32 %v248
    %vm452 = vweird.f32 %v446
    %vm453 = vmor %vm451, %vm452
    %v454 = vsel %vm453, %v446, %v450
    %v455 = vand.u32 2147483647, %v248
    %vm456 = vcmp.eq.f32.partialorder %v455, 8.507059e+37
    %v457 = vand.u32 %v248, 2147483648
    %v458 = vor.u32 1.1754944e-38, %v457
    %v459 = vsel %vm456, %v458, %v454
    %v460 = vmul.f32 1.0, %v459
    %v461 = vrcp.pop %v249
    %v462 = vmul.f32 %v249, %v461
    %v463 = vsub.f32 1.0, %v462
    %v464 = vmul.f32 %v461, %v463
    %v465 = vadd.f32 %v461, %v464
    %vm466 = vweird.f32 %v249
    %vm467 = vweird.f32 %v461
    %vm468 = vmor %vm466, %vm467
    %v469 = vsel %vm468, %v461, %v465
    %v470 = vand.u32 2147483647, %v249
    %vm471 = vcmp.eq.f32.partialorder %v470, 8.507059e+37
    %v472 = vand.u32 %v249, 2147483648
    %v473 = vor.u32 1.1754944e-38, %v472
    %v474 = vsel %vm471, %v473, %v469
    %v475 = vmul.f32 1.0, %v474
    %v476 = vrcp.pop %v250
    %v477 = vmul.f32 %v250, %v476
    %v478 = vsub.f32 1.0, %v477
    %v479 = vmul.f32 %v476, %v478
    %v480 = vadd.f32 %v476, %v479
    %vm481 = vweird.f32 %v250
    %vm482 = vweird.f32 %v476
    %vm483 = vmor %vm481, %vm482
    %v484 = vsel %vm483, %v476, %v480
    %v485 = vand.u32 2147483647, %v250
    %vm486 = vcmp.eq.f32.partialorder %v485, 8.507059e+37
    %v487 = vand.u32 %v250, 2147483648
    %v488 = vor.u32 1.1754944e-38, %v487
    %v489 = vsel %vm486, %v488, %v484
    %v490 = vmul.f32 1.0, %v489
    %v491 = vmul.f32 %v148, %v265
    %v492 = vmul.f32 %v150, %v280
    %v493 = vmul.f32 %v153, %v295
    %v494 = vmul.f32 %v155, %v310
    %v495 = vmul.f32 %v158, %v325
    %v496 = vmul.f32 %v160, %v340
    %v497 = vmul.f32 %v163, %v355
    %v498 = vmul.f32 %v165, %v370
    %v499 = vmul.f32 %v168, %v385
    %v500 = vmul.f32 %v170, %v400
    %v501 = vmul.f32 %v173, %v415
    %v502 = vmul.f32 %v175, %v430
    %v503 = vmul.f32 %v178, %v445
    %v504 = vmul.f32 %v180, %v460
    %v505 = vmul.f32 %v183, %v475
    %v506 = vmul.f32 %v185, %v490
    %v507 = vpack.c.bf16 %v492, %v491
    %v508 = vpack.c.bf16 %v494, %v493
    %v509 = vpack.c.bf16 %v496, %v495
    %v510 = vpack.c.bf16 %v498, %v497
    %v511 = vpack.c.bf16 %v500, %v499
    %v512 = vpack.c.bf16 %v502, %v501
    %v513 = vpack.c.bf16 %v504, %v503
    %v514 = vpack.c.bf16 %v506, %v505
    %v515 = vld [vmem:[%s3] sm:$0xf]
    %v516 = vld [vmem:[%s3 + $0x4] sm:$0xf]
    %v517 = vld [vmem:[%s3 + $0x8] sm:$0xf]
    %v518 = vld [vmem:[%s3 + $0xc] sm:$0xf]
    %v519 = vld [vmem:[%s4] sm:$0x1]
    %v521 = vperm.slane %v519, 0
    %v527 = vunpack.c.l.b16 %v515
    %v528 = vunpack.c.l.b16 %v516
    %v529 = vunpack.c.l.b16 %v517
    %v530 = vunpack.c.l.b16 %v518
    %v531 = vpack.c.b16 %v528, %v527
    %v532 = vpack.c.b16 %v530, %v529
    %vm535 = vcmask 261120
    %v537 = vsel %vm535, %v507, 0
    %v540 = vsel %vm535, %v508, 0
    %v543 = vsel %vm535, %v509, 0
    %v546 = vsel %vm535, %v510, 0
    %v549 = vsel %vm535, %v511, 0
    %v552 = vsel %vm535, %v512, 0
    %v555 = vsel %vm535, %v513, 0
    %v558 = vsel %vm535, %v514, 0
    %560 = vmatpush.bf16.msra.mxu0 0
    %561 = vmatpush.bf16.msra.mxu0 0
    %562 = vmatpush.bf16.msra.mxu0 0
    %563 = vmatpush.bf16.msra.mxu0 0
    %564 = vmatpush.bf16.msra.mxu0 0
    %565 = vmatpush.bf16.msra.mxu0 0
    %566 = vmatpush.bf16.msra.mxu0 %v532
    %567 = vmatpush.bf16.msra.mxu0 %v531
    %568 = vmatmul.bf16.gmra.mxu0 %v537
    %v569 = vpop.f32.mrf.mxu0
    %v570 = vadd.f32 %v521, %v569
    %v571 = vpop.f32.mrf.mxu0
    %v572 = vadd.f32 %v521, %v571
    %573 = vmatmul.bf16.gmra.mxu0 %v540
    %v574 = vpop.f32.mrf.mxu0
    %v575 = vadd.f32 %v521, %v574
    %v576 = vpop.f32.mrf.mxu0
    %v577 = vadd.f32 %v521, %v576
    %578 = vmatmul.bf16.gmra.mxu0 %v543
    %v579 = vpop.f32.mrf.mxu0
    %v580 = vadd.f32 %v521, %v579
    %v581 = vpop.f32.mrf.mxu0
    %v582 = vadd.f32 %v521, %v581
    %583 = vmatmul.bf16.gmra.mxu0 %v546
    %v584 = vpop.f32.mrf.mxu0
    %v585 = vadd.f32 %v521, %v584
    %v586 = vpop.f32.mrf.mxu0
    %v587 = vadd.f32 %v521, %v586
    %588 = vmatmul.bf16.gmra.mxu0 %v549
    %v589 = vpop.f32.mrf.mxu0
    %v590 = vadd.f32 %v521, %v589
    %v591 = vpop.f32.mrf.mxu0
    %v592 = vadd.f32 %v521, %v591
    %593 = vmatmul.bf16.gmra.mxu0 %v552
    %v594 = vpop.f32.mrf.mxu0
    %v595 = vadd.f32 %v521, %v594
    %v596 = vpop.f32.mrf.mxu0
    %v597 = vadd.f32 %v521, %v596
    %598 = vmatmul.bf16.gmra.mxu0 %v555
    %v599 = vpop.f32.mrf.mxu0
    %v600 = vadd.f32 %v521, %v599
    %v601 = vpop.f32.mrf.mxu0
    %v602 = vadd.f32 %v521, %v601
    %603 = vmatmul.bf16.gmra.mxu0 %v558
    %v604 = vpop.f32.mrf.mxu0
    %v605 = vadd.f32 %v521, %v604
    %v606 = vpop.f32.mrf.mxu0
    %v607 = vadd.f32 %v521, %v606
    %608 = vdwg.mxu0
    %v609 = vxor.u32 %v570, 2147483648
    %v610 = vxor.u32 %v572, 2147483648
    %v611 = vxor.u32 %v575, 2147483648
    %v612 = vxor.u32 %v577, 2147483648
    %v613 = vxor.u32 %v580, 2147483648
    %v614 = vxor.u32 %v582, 2147483648
    %v615 = vxor.u32 %v585, 2147483648
    %v616 = vxor.u32 %v587, 2147483648
    %v617 = vxor.u32 %v590, 2147483648
    %v618 = vxor.u32 %v592, 2147483648
    %v619 = vxor.u32 %v595, 2147483648
    %v620 = vxor.u32 %v597, 2147483648
    %v621 = vxor.u32 %v600, 2147483648
    %v622 = vxor.u32 %v602, 2147483648
    %v623 = vxor.u32 %v605, 2147483648
    %v624 = vxor.u32 %v607, 2147483648
    %v625 = vmul.f32 %v609, 1.442695
    %v626 = vpow.pop %v625
    %v627 = vmul.f32 %v610, 1.442695
    %v628 = vpow.pop %v627
    %v629 = vmul.f32 %v611, 1.442695
    %v630 = vpow.pop %v629
    %v631 = vmul.f32 %v612, 1.442695
    %v632 = vpow.pop %v631
    %v633 = vmul.f32 %v613, 1.442695
    %v634 = vpow.pop %v633
    %v635 = vmul.f32 %v614, 1.442695
    %v636 = vpow.pop %v635
    %v637 = vmul.f32 %v615, 1.442695
    %v638 = vpow.pop %v637
    %v639 = vmul.f32 %v616, 1.442695
    %v640 = vpow.pop %v639
    %v641 = vmul.f32 %v617, 1.442695
    %v642 = vpow.pop %v641
    %v643 = vmul.f32 %v618, 1.442695
    %v644 = vpow.pop %v643
    %v645 = vmul.f32 %v619, 1.442695
    %v646 = vpow.pop %v645
    %v647 = vmul.f32 %v620, 1.442695
    %v648 = vpow.pop %v647
    %v649 = vmul.f32 %v621, 1.442695
    %v650 = vpow.pop %v649
    %v651 = vmul.f32 %v622, 1.442695
    %v652 = vpow.pop %v651
    %v653 = vmul.f32 %v623, 1.442695
    %v654 = vpow.pop %v653
    %v655 = vmul.f32 %v624, 1.442695
    %v656 = vpow.pop %v655
    %v657 = vadd.f32 %v626, 1.0
    %v658 = vadd.f32 %v628, 1.0
    %v659 = vadd.f32 %v630, 1.0
    %v660 = vadd.f32 %v632, 1.0
    %v661 = vadd.f32 %v634, 1.0
    %v662 = vadd.f32 %v636, 1.0
    %v663 = vadd.f32 %v638, 1.0
    %v664 = vadd.f32 %v640, 1.0
    %v665 = vadd.f32 %v642, 1.0
    %v666 = vadd.f32 %v644, 1.0
    %v667 = vadd.f32 %v646, 1.0
    %v668 = vadd.f32 %v648, 1.0
    %v669 = vadd.f32 %v650, 1.0
    %v670 = vadd.f32 %v652, 1.0
    %v671 = vadd.f32 %v654, 1.0
    %v672 = vadd.f32 %v656, 1.0
    %v673 = vrcp.pop %v657
    %v674 = vmul.f32 %v657, %v673
    %v675 = vsub.f32 1.0, %v674
    %v676 = vmul.f32 %v673, %v675
    %v677 = vadd.f32 %v673, %v676
    %vm678 = vweird.f32 %v657
    %vm679 = vweird.f32 %v673
    %vm680 = vmor %vm678, %vm679
    %v681 = vsel %vm680, %v673, %v677
    %v682 = vand.u32 2147483647, %v657
    %vm683 = vcmp.eq.f32.partialorder %v682, 8.507059e+37
    %v684 = vand.u32 %v657, 2147483648
    %v685 = vor.u32 1.1754944e-38, %v684
    %v686 = vsel %vm683, %v685, %v681
    %v687 = vmul.f32 1.0, %v686
    %v688 = vrcp.pop %v658
    %v689 = vmul.f32 %v658, %v688
    %v690 = vsub.f32 1.0, %v689
    %v691 = vmul.f32 %v688, %v690
    %v692 = vadd.f32 %v688, %v691
    %vm693 = vweird.f32 %v658
    %vm694 = vweird.f32 %v688
    %vm695 = vmor %vm693, %vm694
    %v696 = vsel %vm695, %v688, %v692
    %v697 = vand.u32 2147483647, %v658
    %vm698 = vcmp.eq.f32.partialorder %v697, 8.507059e+37
    %v699 = vand.u32 %v658, 2147483648
    %v700 = vor.u32 1.1754944e-38, %v699
    %v701 = vsel %vm698, %v700, %v696
    %v702 = vmul.f32 1.0, %v701
    %v703 = vrcp.pop %v659
    %v704 = vmul.f32 %v659, %v703
    %v705 = vsub.f32 1.0, %v704
    %v706 = vmul.f32 %v703, %v705
    %v707 = vadd.f32 %v703, %v706
    %vm708 = vweird.f32 %v659
    %vm709 = vweird.f32 %v703
    %vm710 = vmor %vm708, %vm709
    %v711 = vsel %vm710, %v703, %v707
    %v712 = vand.u32 2147483647, %v659
    %vm713 = vcmp.eq.f32.partialorder %v712, 8.507059e+37
    %v714 = vand.u32 %v659, 2147483648
    %v715 = vor.u32 1.1754944e-38, %v714
    %v716 = vsel %vm713, %v715, %v711
    %v717 = vmul.f32 1.0, %v716
    %v718 = vrcp.pop %v660
    %v719 = vmul.f32 %v660, %v718
    %v720 = vsub.f32 1.0, %v719
    %v721 = vmul.f32 %v718, %v720
    %v722 = vadd.f32 %v718, %v721
    %vm723 = vweird.f32 %v660
    %vm724 = vweird.f32 %v718
    %vm725 = vmor %vm723, %vm724
    %v726 = vsel %vm725, %v718, %v722
    %v727 = vand.u32 2147483647, %v660
    %vm728 = vcmp.eq.f32.partialorder %v727, 8.507059e+37
    %v729 = vand.u32 %v660, 2147483648
    %v730 = vor.u32 1.1754944e-38, %v729
    %v731 = vsel %vm728, %v730, %v726
    %v732 = vmul.f32 1.0, %v731
    %v733 = vrcp.pop %v661
    %v734 = vmul.f32 %v661, %v733
    %v735 = vsub.f32 1.0, %v734
    %v736 = vmul.f32 %v733, %v735
    %v737 = vadd.f32 %v733, %v736
    %vm738 = vweird.f32 %v661
    %vm739 = vweird.f32 %v733
    %vm740 = vmor %vm738, %vm739
    %v741 = vsel %vm740, %v733, %v737
    %v742 = vand.u32 2147483647, %v661
    %vm743 = vcmp.eq.f32.partialorder %v742, 8.507059e+37
    %v744 = vand.u32 %v661, 2147483648
    %v745 = vor.u32 1.1754944e-38, %v744
    %v746 = vsel %vm743, %v745, %v741
    %v747 = vmul.f32 1.0, %v746
    %v748 = vrcp.pop %v662
    %v749 = vmul.f32 %v662, %v748
    %v750 = vsub.f32 1.0, %v749
    %v751 = vmul.f32 %v748, %v750
    %v752 = vadd.f32 %v748, %v751
    %vm753 = vweird.f32 %v662
    %vm754 = vweird.f32 %v748
    %vm755 = vmor %vm753, %vm754
    %v756 = vsel %vm755, %v748, %v752
    %v757 = vand.u32 2147483647, %v662
    %vm758 = vcmp.eq.f32.partialorder %v757, 8.507059e+37
    %v759 = vand.u32 %v662, 2147483648
    %v760 = vor.u32 1.1754944e-38, %v759
    %v761 = vsel %vm758, %v760, %v756
    %v762 = vmul.f32 1.0, %v761
    %v763 = vrcp.pop %v663
    %v764 = vmul.f32 %v663, %v763
    %v765 = vsub.f32 1.0, %v764
    %v766 = vmul.f32 %v763, %v765
    %v767 = vadd.f32 %v763, %v766
    %vm768 = vweird.f32 %v663
    %vm769 = vweird.f32 %v763
    %vm770 = vmor %vm768, %vm769
    %v771 = vsel %vm770, %v763, %v767
    %v772 = vand.u32 2147483647, %v663
    %vm773 = vcmp.eq.f32.partialorder %v772, 8.507059e+37
    %v774 = vand.u32 %v663, 2147483648
    %v775 = vor.u32 1.1754944e-38, %v774
    %v776 = vsel %vm773, %v775, %v771
    %v777 = vmul.f32 1.0, %v776
    %v778 = vrcp.pop %v664
    %v779 = vmul.f32 %v664, %v778
    %v780 = vsub.f32 1.0, %v779
    %v781 = vmul.f32 %v778, %v780
    %v782 = vadd.f32 %v778, %v781
    %vm783 = vweird.f32 %v664
    %vm784 = vweird.f32 %v778
    %vm785 = vmor %vm783, %vm784
    %v786 = vsel %vm785, %v778, %v782
    %v787 = vand.u32 2147483647, %v664
    %vm788 = vcmp.eq.f32.partialorder %v787, 8.507059e+37
    %v789 = vand.u32 %v664, 2147483648
    %v790 = vor.u32 1.1754944e-38, %v789
    %v791 = vsel %vm788, %v790, %v786
    %v792 = vmul.f32 1.0, %v791
    %v793 = vrcp.pop %v665
    %v794 = vmul.f32 %v665, %v793
    %v795 = vsub.f32 1.0, %v794
    %v796 = vmul.f32 %v793, %v795
    %v797 = vadd.f32 %v793, %v796
    %vm798 = vweird.f32 %v665
    %vm799 = vweird.f32 %v793
    %vm800 = vmor %vm798, %vm799
    %v801 = vsel %vm800, %v793, %v797
    %v802 = vand.u32 2147483647, %v665
    %vm803 = vcmp.eq.f32.partialorder %v802, 8.507059e+37
    %v804 = vand.u32 %v665, 2147483648
    %v805 = vor.u32 1.1754944e-38, %v804
    %v806 = vsel %vm803, %v805, %v801
    %v807 = vmul.f32 1.0, %v806
    %v808 = vrcp.pop %v666
    %v809 = vmul.f32 %v666, %v808
    %v810 = vsub.f32 1.0, %v809
    %v811 = vmul.f32 %v808, %v810
    %v812 = vadd.f32 %v808, %v811
    %vm813 = vweird.f32 %v666
    %vm814 = vweird.f32 %v808
    %vm815 = vmor %vm813, %vm814
    %v816 = vsel %vm815, %v808, %v812
    %v817 = vand.u32 2147483647, %v666
    %vm818 = vcmp.eq.f32.partialorder %v817, 8.507059e+37
    %v819 = vand.u32 %v666, 2147483648
    %v820 = vor.u32 1.1754944e-38, %v819
    %v821 = vsel %vm818, %v820, %v816
    %v822 = vmul.f32 1.0, %v821
    %v823 = vrcp.pop %v667
    %v824 = vmul.f32 %v667, %v823
    %v825 = vsub.f32 1.0, %v824
    %v826 = vmul.f32 %v823, %v825
    %v827 = vadd.f32 %v823, %v826
    %vm828 = vweird.f32 %v667
    %vm829 = vweird.f32 %v823
    %vm830 = vmor %vm828, %vm829
    %v831 = vsel %vm830, %v823, %v827
    %v832 = vand.u32 2147483647, %v667
    %vm833 = vcmp.eq.f32.partialorder %v832, 8.507059e+37
    %v834 = vand.u32 %v667, 2147483648
    %v835 = vor.u32 1.1754944e-38, %v834
    %v836 = vsel %vm833, %v835, %v831
    %v837 = vmul.f32 1.0, %v836
    %v838 = vrcp.pop %v668
    %v839 = vmul.f32 %v668, %v838
    %v840 = vsub.f32 1.0, %v839
    %v841 = vmul.f32 %v838, %v840
    %v842 = vadd.f32 %v838, %v841
    %vm843 = vweird.f32 %v668
    %vm844 = vweird.f32 %v838
    %vm845 = vmor %vm843, %vm844
    %v846 = vsel %vm845, %v838, %v842
    %v847 = vand.u32 2147483647, %v668
    %vm848 = vcmp.eq.f32.partialorder %v847, 8.507059e+37
    %v849 = vand.u32 %v668, 2147483648
    %v850 = vor.u32 1.1754944e-38, %v849
    %v851 = vsel %vm848, %v850, %v846
    %v852 = vmul.f32 1.0, %v851
    %v853 = vrcp.pop %v669
    %v854 = vmul.f32 %v669, %v853
    %v855 = vsub.f32 1.0, %v854
    %v856 = vmul.f32 %v853, %v855
    %v857 = vadd.f32 %v853, %v856
    %vm858 = vweird.f32 %v669
    %vm859 = vweird.f32 %v853
    %vm860 = vmor %vm858, %vm859
    %v861 = vsel %vm860, %v853, %v857
    %v862 = vand.u32 2147483647, %v669
    %vm863 = vcmp.eq.f32.partialorder %v862, 8.507059e+37
    %v864 = vand.u32 %v669, 2147483648
    %v865 = vor.u32 1.1754944e-38, %v864
    %v866 = vsel %vm863, %v865, %v861
    %v867 = vmul.f32 1.0, %v866
    %v868 = vrcp.pop %v670
    %v869 = vmul.f32 %v670, %v868
    %v870 = vsub.f32 1.0, %v869
    %v871 = vmul.f32 %v868, %v870
    %v872 = vadd.f32 %v868, %v871
    %vm873 = vweird.f32 %v670
    %vm874 = vweird.f32 %v868
    %vm875 = vmor %vm873, %vm874
    %v876 = vsel %vm875, %v868, %v872
    %v877 = vand.u32 2147483647, %v670
    %vm878 = vcmp.eq.f32.partialorder %v877, 8.507059e+37
    %v879 = vand.u32 %v670, 2147483648
    %v880 = vor.u32 1.1754944e-38, %v879
    %v881 = vsel %vm878, %v880, %v876
    %v882 = vmul.f32 1.0, %v881
    %v883 = vrcp.pop %v671
    %v884 = vmul.f32 %v671, %v883
    %v885 = vsub.f32 1.0, %v884
    %v886 = vmul.f32 %v883, %v885
    %v887 = vadd.f32 %v883, %v886
    %vm888 = vweird.f32 %v671
    %vm889 = vweird.f32 %v883
    %vm890 = vmor %vm888, %vm889
    %v891 = vsel %vm890, %v883, %v887
    %v892 = vand.u32 2147483647, %v671
    %vm893 = vcmp.eq.f32.partialorder %v892, 8.507059e+37
    %v894 = vand.u32 %v671, 2147483648
    %v895 = vor.u32 1.1754944e-38, %v894
    %v896 = vsel %vm893, %v895, %v891
    %v897 = vmul.f32 1.0, %v896
    %v898 = vrcp.pop %v672
    %v899 = vmul.f32 %v672, %v898
    %v900 = vsub.f32 1.0, %v899
    %v901 = vmul.f32 %v898, %v900
    %v902 = vadd.f32 %v898, %v901
    %vm903 = vweird.f32 %v672
    %vm904 = vweird.f32 %v898
    %vm905 = vmor %vm903, %vm904
    %v906 = vsel %vm905, %v898, %v902
    %v907 = vand.u32 2147483647, %v672
    %vm908 = vcmp.eq.f32.partialorder %v907, 8.507059e+37
    %v909 = vand.u32 %v672, 2147483648
    %v910 = vor.u32 1.1754944e-38, %v909
    %v911 = vsel %vm908, %v910, %v906
    %v912 = vmul.f32 1.0, %v911
    %v913 = vmul.f32 %v570, %v687
    %v914 = vmul.f32 %v572, %v702
    %v915 = vmul.f32 %v575, %v717
    %v916 = vmul.f32 %v577, %v732
    %v917 = vmul.f32 %v580, %v747
    %v918 = vmul.f32 %v582, %v762
    %v919 = vmul.f32 %v585, %v777
    %v920 = vmul.f32 %v587, %v792
    %v921 = vmul.f32 %v590, %v807
    %v922 = vmul.f32 %v592, %v822
    %v923 = vmul.f32 %v595, %v837
    %v924 = vmul.f32 %v597, %v852
    %v925 = vmul.f32 %v600, %v867
    %v926 = vmul.f32 %v602, %v882
    %v927 = vmul.f32 %v605, %v897
    %v928 = vmul.f32 %v607, %v912
    %v929 = vld [vmem:[%s5] sm:$0x3]
    %930 = vmatpush.msra.mxu0 %v928
    %931 = vmatpush.msra.mxu0 %v927
    %932 = vmatpush.msra.mxu0 %v926
    %933 = vmatpush.msra.mxu0 %v925
    %934 = vmatpush.msra.mxu0 %v924
    %935 = vmatpush.msra.mxu0 %v923
    %936 = vmatpush.msra.mxu0 %v922
    %937 = vmatpush.msra.mxu0 %v921
    %938 = vmatpush.msra.mxu0 %v920
    %939 = vmatpush.msra.mxu0 %v919
    %940 = vmatpush.msra.mxu0 %v918
    %941 = vmatpush.msra.mxu0 %v917
    %942 = vmatpush.msra.mxu0 %v916
    %943 = vmatpush.msra.mxu0 %v915
    %944 = vmatpush.msra.mxu0 %v914
    %945 = vmatpush.msra.mxu0 %v913
    %946 = vmatmul.f32.gmra.mxu0 %v929
    %v947 = vpop.f32.mrf.mxu0
    %v948 = vadd.f32 0.0, %v947
    %949 = vdwg.mxu0
    %v950 = vld [vmem:[%s6] sm:$0xff]
    %v951 = vld [vmem:[%s6 + $0x8] sm:$0xff]
    %v952 = vld [vmem:[%s6 + $0x10] sm:$0xff]
    %v953 = vld [vmem:[%s6 + $0x18] sm:$0xff]
    %v954 = vld [vmem:[%s6 + $0x20] sm:$0xff]
    %v955 = vld [vmem:[%s6 + $0x28] sm:$0xff]
    %v956 = vld [vmem:[%s6 + $0x30] sm:$0xff]
    %v957 = vld [vmem:[%s6 + $0x38] sm:$0xff]
    %v958 = vld [vmem:[%s7] sm:$0x1]
    %v960 = vperm.slane %v958, 0
    %vm962 = vcmask 523264
    %v964 = vsel %vm962, %v948, 0
    %966 = vmatpush.msra.mxu0 0.0
    %967 = vmatpush.msra.mxu0 0.0
    %968 = vmatpush.msra.mxu0 0.0
    %969 = vmatpush.msra.mxu0 0.0
    %970 = vmatpush.msra.mxu0 0.0
    %971 = vmatpush.msra.mxu0 0.0
    %972 = vmatpush.msra.mxu0 0.0
    %973 = vmatpush.msra.mxu0 0.0
    %974 = vmatpush.msra.mxu0 %v957
    %975 = vmatpush.msra.mxu0 %v956
    %976 = vmatpush.msra.mxu0 %v955
    %977 = vmatpush.msra.mxu0 %v954
    %978 = vmatpush.msra.mxu0 %v953
    %979 = vmatpush.msra.mxu0 %v952
    %980 = vmatpush.msra.mxu0 %v951
    %981 = vmatpush.msra.mxu0 %v950
    %982 = vmatmul.f32.gmra.mxu0 %v964
    %v983 = vpop.f32.mrf.mxu0
    %v984 = vadd.f32 %v960, %v983
    %985 = vdwg.mxu0
    %986 = vst [vmem:[#allocation2] sm:$0x3] %v984
    // Predicated region
    $region34: #{model_forward.1} parent=1 // pred_check
      _
    $region35: #{model_forward.1} parent=1 // pred_check_branch
      %988 = sbr.rel (0) target = $region37
    $region36: #{model_forward.1} parent=1 // pred_region
      %990 = vsyncadd [#allocation3], 0
      %s992 = sshll.u32 [#allocation2], 4
      %s993 = int_to_ptr.vmem [resolvable:$true] %s992
      %s994 = sshll.u32 %s8, 4
      %s995 = int_to_ptr.hbm [resolvable:$true] %s994
      %997 = dma.vmem_to_hbm [thread:$0]  %s993, 32, %s995, [#allocation3]
    $region37: #{model_forward.1} parent=1 // pred_fallthru
      _
    // Predicated region
    $region38: #{model_forward.1} parent=1 // pred_check
      _
    $region39: #{model_forward.1} parent=1 // pred_check_branch
      %999 = sbr.rel (0) target = $region41
    $region40: #{model_forward.1} parent=1 // pred_region
      %1001 = dma.done [#allocation3], 32
    $region41: #{model_forward.1} parent=1 // pred_fallthru
      _
    %1002 = vsyncpa [#allocation3], 1

</llo_original>
